<compile_context>
chip_gen: v5e
topology: v5e:2x2
jax: 0.10.0
libtpu: 0.0.40
codegen_flags: <defaults>
</compile_context>

<pallas_src>
import functools
from collections import namedtuple
from typing import Sequence

import jax
import jax.numpy as jnp
from jax.experimental import pallas as pl
from jax.experimental.pallas import tpu as pltpu

LinearSpec = namedtuple("LinearSpec", "units activation")


# ----------------------------- helpers -----------------------------
def _round_up(x, m):
    return ((x + m - 1) // m) * m


def _vmem_capacity_bytes():
    try:
        return int(pltpu.get_tpu_info().vmem_capacity_bytes)
    except Exception:
        return 64 << 20  # conservative fallback (v7x per-TC VMEM)


def _apply_activation(x, name):
    if name is None or name in ("identity", "linear", "none"):
        return x
    if name == "relu":
        return jnp.maximum(x, 0.0)
    if name == "tanh":
        return jnp.tanh(x)
    if name == "sigmoid":
        return jax.nn.sigmoid(x)
    if name == "gelu":
        return jax.nn.gelu(x)
    raise ValueError(f"unsupported activation: {name}")


def _select_batch_tile(B, per_row_bytes, resident_bytes, vmem_cap):
    """Largest batch tile that fits the VMEM budget (cap 1024), multiple of 8.

    Splits into >=2 tiles for large batches so the 'parallel' batch axis can
    shard across v7x's two TensorCores; tiny batches stay at grid=(1,).
    """
    if B <= 8:
        return B
    budget = int(vmem_cap * 0.70) - resident_bytes - (2 << 20)
    tb = max(8, min(1024, budget // max(per_row_bytes, 1)))
    tb = (tb // 8) * 8
    if B >= 64:
        tb = min(tb, _round_up(pl.cdiv(B, 2), 8))  # >=2 grid steps (megacore)
    if tb >= B:
        return B
    return tb


# ----------------------------- Pallas kernel -----------------------------
def _mlp_fused_kernel(x_ref, *refs, activations, compute_dtype):
    """Fused MLP forward for one batch tile.

    refs = (w_0, b_0, w_1, b_1, ..., out_ref).  The batch tile is loaded once;
    intermediates never leave VMEM.  Dot operands are bf16, accumulation /
    bias-add / activation are f32; hidden activations are re-packed to bf16
    between layers.  Dropout(p=0) / eval mode -> identity.
    """
    out_ref = refs[-1]
    params = refs[:-1]
    n_layers = len(activations)

    h = x_ref[...].astype(compute_dtype)  # cast in-kernel: x DMA stays f32 4B/elem
    for li, act in enumerate(activations):
        w = params[2 * li][...]          # (d_in, d_out), compute_dtype (bf16)
        b = params[2 * li + 1][...]      # (1, d_out), float32
        acc = jnp.dot(h, w, preferred_element_type=jnp.float32) + b
        acc = _apply_activation(acc, act)
        if li + 1 < n_layers:
            h = acc.astype(compute_dtype)  # halve live intermediate footprint
        else:
            h = acc                        # final layer stays f32 for the store
    out_ref[...] = h.astype(out_ref.dtype)


def mlp_forward_pallas(x, weights, biases, activations, *,
                       num_features=None, compute_dtype=jnp.bfloat16,
                       out_dtype=jnp.float32):
    """x: (B, D_in) f32.  weights[i]: (d_in_i, d_out_i) bf16 (final layer may
    be lane-padded); biases[i]: (1, d_out_i) f32."""
    B, d_in = x.shape
    f_pad = weights[-1].shape[1]
    if num_features is None:
        num_features = f_pad

    widths = [d_in] + [w.shape[1] for w in weights]
    max_width = max(widths)
    out_itemsize = jnp.dtype(out_dtype).itemsize
    x_itemsize = jnp.dtype(x.dtype).itemsize

    # VMEM budget: params are single-buffered (Buffered(1)); x/out double-buffered.
    resident = (sum(w.size * w.dtype.itemsize for w in weights)
                + sum(b.size * b.dtype.itemsize for b in biases))
    per_row = (2 * d_in * x_itemsize          # x tile, double-buffered
               + 2 * f_pad * out_itemsize     # out tile, double-buffered
               + 6 * max_width)               # live f32 acc + bf16 h intermediates
    # TODO(synk): if the bf16 weights alone exceed ~70% of VMEM, add N/K tiling
    # (grid axis over the widest layer) instead of keeping every weight resident.

    vmem_cap = _vmem_capacity_bytes()
    tb = _select_batch_tile(B, per_row, resident, vmem_cap)
    grid = (pl.cdiv(B, tb),)
    vmem_limit = min(int(vmem_cap),
                     max(32 << 20, resident + tb * per_row + (4 << 20)))

    operands = [x]
    in_specs = [pl.BlockSpec((tb, d_in), lambda i: (i, 0))]
    for w, b in zip(weights, biases):
        din, dout = w.shape
        operands.append(w)
        operands.append(b)
        # Grid-invariant parameters: constant index_map + single buffer
        # (no pointless double-buffering of resident weights).
        in_specs.append(pl.BlockSpec((din, dout), lambda i: (0, 0),
                                     pipeline_mode=pl.Buffered(buffer_count=1)))
        in_specs.append(pl.BlockSpec((1, dout), lambda i: (0, 0),
                                     pipeline_mode=pl.Buffered(buffer_count=1)))

    kernel = functools.partial(_mlp_fused_kernel,
                               activations=tuple(activations),
                               compute_dtype=compute_dtype)

    out = pl.pallas_call(
        kernel,
        out_shape=jax.ShapeDtypeStruct((B, f_pad), out_dtype),
        grid_spec=pltpu.PrefetchScalarGridSpec(
            num_scalar_prefetch=0,
            grid=grid,
            in_specs=in_specs,
            out_specs=pl.BlockSpec((tb, f_pad), lambda i: (i, 0)),
        ),
        compiler_params=pltpu.CompilerParams(
            dimension_semantics=("parallel",),   # batch tiles independent (v7x 2-TC)
            vmem_limit_bytes=vmem_limit,
        ),
    )(*operands)

    if num_features != f_pad:
        out = out[:, :num_features]   # drop lane padding of the final layer
    return out


# ----------------------------- module port -----------------------------
class MLPFeatureExtractorPallas:
    """Port of yaaf MLPFeatureExtractor: [Linear -> activation -> Dropout]*L."""

    def __init__(self, num_inputs: int, layers: Sequence[LinearSpec],
                 dropout: float = 0.0, *, key=None,
                 compute_dtype=jnp.bfloat16, out_dtype=jnp.float32):
        # TODO(synk): training-mode Dropout with p>0 not implemented; p=0 /
        # eval mode (the forward-pass semantics needed here) is the identity.
        assert dropout == 0.0
        self._num_inputs = num_inputs
        self._layer_specs = tuple(layers)
        self._compute_dtype = compute_dtype
        self._out_dtype = out_dtype

        # float32 reference parameters (torch.nn.Linear default init range)
        self.weights, self.biases, self._activations = [], [], []
        last = num_inputs
        key = key if key is not None else jax.random.PRNGKey(42)
        for units, activation in layers:
            key, kw, kb = jax.random.split(key, 3)
            bound = 1.0 / (last ** 0.5)
            w = jax.random.uniform(kw, (last, units), jnp.float32, -bound, bound)
            b = jax.random.uniform(kb, (units,), jnp.float32, -bound, bound)
            self.weights.append(w)
            self.biases.append(b)
            self._activations.append(activation)
            last = units
        self._num_features = last

        # Kernel-side parameters, prepared ONCE:
        #   * weights pre-cast to bf16 (no per-call convert / HBM round trip)
        #   * biases pre-reshaped to (1, dout) float32
        #   * final layer zero-padded to a multiple of 128 lanes so the output
        #     store is unmasked; the wrapper slices back to num_features.
        self._f_pad = _round_up(self._num_features, 128)
        self._weights_c, self._biases_c = [], []
        n_layers = len(self.weights)
        for li, (w, b) in enumerate(zip(self.weights, self.biases)):
            if li == n_layers - 1 and self._f_pad != self._num_features:
                pad = self._f_pad - self._num_features
                w = jnp.pad(w, ((0, 0), (0, pad)))
                b = jnp.pad(b, ((0, pad),))
            self._weights_c.append(w.astype(compute_dtype))
            self._biases_c.append(b.reshape(1, -1).astype(jnp.float32))

    @property
    def num_features(self):
        return self._num_features

    @property
    def input_shape(self):
        return (self._num_inputs,)

    def __call__(self, x):
        return mlp_forward_pallas(
            x, self._weights_c, self._biases_c, self._activations,
            num_features=self._num_features,
            compute_dtype=self._compute_dtype,
            out_dtype=self._out_dtype)


# ----------------------------- reference -----------------------------
def _reference_forward(x, model):
    h = x
    for w, b, act in zip(model.weights, model.biases, model._activations):
        h = h @ w + b
        h = _apply_activation(h, act)
    return h


if __name__ == "__main__":
    key = jax.random.PRNGKey(0)
    B, D = 2, 16
    x = jax.random.normal(key, (B, D), dtype=jnp.float32)

    layers = [
        LinearSpec(units=32, activation="relu"),
        LinearSpec(units=64, activation="relu"),
    ]
    model = MLPFeatureExtractorPallas(D, layers, dropout=0.0,
                                      key=jax.random.PRNGKey(1))

    feats = jax.block_until_ready(model(x))
    assert feats.shape == (B, model.num_features), feats.shape

    ref = jax.block_until_ready(_reference_forward(x, model))
    # bf16 MXU operands / bf16 hidden activations vs f32 reference -> relaxed tol.
    assert jnp.allclose(feats, ref, atol=1e-2, rtol=1e-2), \
        float(jnp.max(jnp.abs(feats - ref)))

    print("KERNEL_OK")
</pallas_src>

<mosaic_0001>
module attributes {stable_mosaic.version = 11 : i64} {
  func.func @_mlp_fused_kernel(%arg0: i32, %arg1: memref<2x16xf32, #tpu.memory_space<vmem>>, %arg2: memref<16x32xbf16, #tpu.memory_space<vmem>>, %arg3: memref<1x32xf32, #tpu.memory_space<vmem>>, %arg4: memref<32x128xbf16, #tpu.memory_space<vmem>>, %arg5: memref<1x128xf32, #tpu.memory_space<vmem>>, %arg6: memref<2x128xf32, #tpu.memory_space<vmem>>) attributes {dimension_semantics = [#tpu.dimension_semantics<parallel>], iteration_bounds = array<i64: 1>, scalar_prefetch = 0 : i64, scratch_operands = 0 : i64, tpu.core_type = #tpu.core_type<tc>, window_params = [{transform_indices = @transform_0, window_bounds = array<i64: 2, 16>}, {pipeline_mode = #tpu.pipeline_mode<synchronous>, transform_indices = @transform_1, window_bounds = array<i64: 16, 32>}, {pipeline_mode = #tpu.pipeline_mode<synchronous>, transform_indices = @transform_2, window_bounds = array<i64: 1, 32>}, {pipeline_mode = #tpu.pipeline_mode<synchronous>, transform_indices = @transform_3, window_bounds = array<i64: 32, 128>}, {pipeline_mode = #tpu.pipeline_mode<synchronous>, transform_indices = @transform_4, window_bounds = array<i64: 1, 128>}, {transform_indices = @transform_5, window_bounds = array<i64: 2, 128>}]} {
    %c0 = arith.constant 0 : index
    %c0_0 = arith.constant 0 : index
    %0 = vector.load %arg1[%c0, %c0_0] : memref<2x16xf32, #tpu.memory_space<vmem>>, vector<2x16xf32>
    %1 = arith.truncf %0 : vector<2x16xf32> to vector<2x16xbf16>
    %c0_1 = arith.constant 0 : index
    %c0_2 = arith.constant 0 : index
    %2 = vector.load %arg2[%c0_1, %c0_2] : memref<16x32xbf16, #tpu.memory_space<vmem>>, vector<16x32xbf16>
    %c0_3 = arith.constant 0 : index
    %c0_4 = arith.constant 0 : index
    %3 = vector.load %arg3[%c0_3, %c0_4] : memref<1x32xf32, #tpu.memory_space<vmem>>, vector<1x32xf32>
    %cst = arith.constant dense<0.000000e+00> : vector<2x32xf32>
    %4 = tpu.matmul %1, %2, %cst {dimension_numbers = #tpu.dot_dimension_numbers<[1], [0], [0], [1], [0, 0, 1, 1], [], []>} : vector<2x16xbf16>, vector<16x32xbf16>, vector<2x32xf32> -> vector<2x32xf32>
    %5 = vector.broadcast %3 : vector<1x32xf32> to vector<2x32xf32>
    %6 = arith.addf %4, %5 : vector<2x32xf32>
    %cst_5 = arith.constant 0.000000e+00 : f32
    %7 = vector.broadcast %cst_5 : f32 to vector<2x32xf32>
    %8 = arith.maximumf %6, %7 : vector<2x32xf32>
    %9 = arith.truncf %8 : vector<2x32xf32> to vector<2x32xbf16>
    %c0_6 = arith.constant 0 : index
    %c0_7 = arith.constant 0 : index
    %10 = vector.load %arg4[%c0_6, %c0_7] : memref<32x128xbf16, #tpu.memory_space<vmem>>, vector<32x128xbf16>
    %c0_8 = arith.constant 0 : index
    %c0_9 = arith.constant 0 : index
    %11 = vector.load %arg5[%c0_8, %c0_9] : memref<1x128xf32, #tpu.memory_space<vmem>>, vector<1x128xf32>
    %cst_10 = arith.constant dense<0.000000e+00> : vector<2x128xf32>
    %12 = tpu.matmul %9, %10, %cst_10 {dimension_numbers = #tpu.dot_dimension_numbers<[1], [0], [0], [1], [0, 0, 1, 1], [], []>} : vector<2x32xbf16>, vector<32x128xbf16>, vector<2x128xf32> -> vector<2x128xf32>
    %13 = vector.broadcast %11 : vector<1x128xf32> to vector<2x128xf32>
    %14 = arith.addf %12, %13 : vector<2x128xf32>
    %cst_11 = arith.constant 0.000000e+00 : f32
    %15 = vector.broadcast %cst_11 : f32 to vector<2x128xf32>
    %16 = arith.maximumf %14, %15 : vector<2x128xf32>
    %c0_12 = arith.constant 0 : index
    %c0_13 = arith.constant 0 : index
    %17 = vector.load %arg6[%c0_12, %c0_13] : memref<2x128xf32, #tpu.memory_space<vmem>>, vector<2x128xf32>
    tpu.vector_store %arg6[%c0_12, %c0_13], %16 {strides = array<i32>} : memref<2x128xf32, #tpu.memory_space<vmem>>, vector<2x128xf32>,
    return
  }
  func.func @transform_0(%arg0: i32) -> (i32, i32) {
    %c0_i32 = arith.constant 0 : i32
    %c0_i32_0 = arith.constant 0 : i32
    return %arg0, %c0_i32 : i32, i32
  }
  func.func @transform_1(%arg0: i32) -> (i32, i32) {
    %c0_i32 = arith.constant 0 : i32
    %c0_i32_0 = arith.constant 0 : i32
    %c0_i32_1 = arith.constant 0 : i32
    return %c0_i32, %c0_i32_0 : i32, i32
  }
  func.func @transform_2(%arg0: i32) -> (i32, i32) {
    %c0_i32 = arith.constant 0 : i32
    %c0_i32_0 = arith.constant 0 : i32
    %c0_i32_1 = arith.constant 0 : i32
    return %c0_i32, %c0_i32_0 : i32, i32
  }
  func.func @transform_3(%arg0: i32) -> (i32, i32) {
    %c0_i32 = arith.constant 0 : i32
    %c0_i32_0 = arith.constant 0 : i32
    %c0_i32_1 = arith.constant 0 : i32
    return %c0_i32, %c0_i32_0 : i32, i32
  }
  func.func @transform_4(%arg0: i32) -> (i32, i32) {
    %c0_i32 = arith.constant 0 : i32
    %c0_i32_0 = arith.constant 0 : i32
    %c0_i32_1 = arith.constant 0 : i32
    return %c0_i32, %c0_i32_0 : i32, i32
  }
  func.func @transform_5(%arg0: i32) -> (i32, i32) {
    %c0_i32 = arith.constant 0 : i32
    %c0_i32_0 = arith.constant 0 : i32
    return %arg0, %c0_i32 : i32, i32
  }
}

</mosaic_0001>

<llo_original>
// kernel: tpu_custom_call.1
$region0: #{tpu_custom_call.1}
  #allocation0 [shape = 'u32[]', space=smem, size = 0x4, offset = 0x4, fixed_abs, tag = 'smem constant byte address 0x4 - core index']
  #allocation1 [shape = 'u32[72,128]{1,0:T(1,128)}', space=vmem, size = 0x9000, scoped, tag = 'internal scratch']
  %s0 = inlined_call_operand.hbm [shape: f32[2,16], index: 0, kind: input, shape index: {}]
  %s1 = inlined_call_operand.hbm [shape: bf16[16,32], index: 1, kind: input, shape index: {}]
  %s2 = inlined_call_operand.vmem [shape: f32[1,32], index: 2, kind: input, shape index: {}]
  %s3 = inlined_call_operand.hbm [shape: bf16[32,128], index: 3, kind: input, shape index: {}]
  %s4 = inlined_call_operand.vmem [shape: f32[1,128], index: 4, kind: input, shape index: {}]
  %s5 = inlined_call_operand.hbm [shape: f32[2,128], index: 5, kind: output, shape index: {}]
  %s6 = sld [smem:[#allocation0]]
  $region42: #{tpu_custom_call.1} parent=0
    _
  %s8 = ssub.s32 1, %s6
  %s9 = scalar_select 0, %s8, %s6
  $region1: #{tpu_custom_call.1} parent=0
    #allocation2 [shape = 'u8[1024]{0}', space=vmem, size = 0x400, scoped, tag = 'input window, operand 0, single buffered']
    #allocation3 [shape = 's32[1]{0}', space=sflag, size = 0x4, scoped, tag = 'scoped memory for tpu_custom_call.1']
    #allocation4 [shape = 's32[1]{0}', space=sflag, size = 0x4, scoped, tag = 'scoped memory for tpu_custom_call.1']
    #allocation5 [shape = 'u8[4096]{0}', space=vmem, size = 0x1000, scoped, tag = 'input window, operand 1, single buffered']
    #allocation6 [shape = 's32[1]{0}', space=sflag, size = 0x4, scoped, tag = 'scoped memory for tpu_custom_call.1']
    #allocation7 [shape = 'u8[8192]{0}', space=vmem, size = 0x2000, scoped, tag = 'input window, operand 3, single buffered']
    #allocation8 [shape = 'u8[1024]{0}', space=vmem, size = 0x400, scoped, tag = 'output window, operand 0, single buffered']
    %10 = vsyncpa [#allocation3], 0
    %11 = vsyncpa [#allocation6], 0
    %12 = vsyncpa [#allocation4], 0
    // Predicated region
    $region2: #{tpu_custom_call.1} parent=1 // pred_check
      _
    $region3: #{tpu_custom_call.1} parent=1 // pred_check_branch
      %14 = sbr.rel (0) target = $region5
    $region4: #{tpu_custom_call.1} parent=1 // pred_region
      %16 = vsyncadd [#allocation3], 0
      %s18 = sshll.u32 %s0, 4
      %s19 = int_to_ptr.hbm [resolvable:$true] %s18
      %s20 = sshll.u32 [#allocation2], 4
      %s21 = int_to_ptr.vmem [resolvable:$true] %s20
      %23 = dma.hbm_to_vmem [thread:$0]  %s19, 32, %s21, [#allocation3]
    $region5: #{tpu_custom_call.1} parent=1 // pred_fallthru
      _
    // Predicated region
    $region6: #{tpu_custom_call.1} parent=1 // pred_check
      _
    $region7: #{tpu_custom_call.1} parent=1 // pred_check_branch
      %25 = sbr.rel (0) target = $region9
    $region8: #{tpu_custom_call.1} parent=1 // pred_region
      %27 = vsyncadd [#allocation6], 0
      %s28 = sshll.u32 %s1, 4
      %s29 = int_to_ptr.hbm [resolvable:$true] %s28
      %s30 = sshll.u32 [#allocation5], 4
      %s31 = int_to_ptr.vmem [resolvable:$true] %s30
      %36 = dma.hbm_to_vmem [thread:$0]  %s29, 128, %s31, [#allocation6], 64, 64, 4
    $region9: #{tpu_custom_call.1} parent=1 // pred_fallthru
      _
    // Predicated region
    $region10: #{tpu_custom_call.1} parent=1 // pred_check
      _
    $region11: #{tpu_custom_call.1} parent=1 // pred_check_branch
      %38 = sbr.rel (0) target = $region13
    $region12: #{tpu_custom_call.1} parent=1 // pred_region
      _
    $region13: #{tpu_custom_call.1} parent=1 // pred_fallthru
      _
    // Predicated region
    $region14: #{tpu_custom_call.1} parent=1 // pred_check
      _
    $region15: #{tpu_custom_call.1} parent=1 // pred_check_branch
      %40 = sbr.rel (0) target = $region17
    $region16: #{tpu_custom_call.1} parent=1 // pred_region
      %42 = vsyncadd [#allocation6], 0
      %s43 = sshll.u32 %s3, 4
      %s44 = int_to_ptr.hbm [resolvable:$true] %s43
      %s45 = sshll.u32 [#allocation7], 4
      %s46 = int_to_ptr.vmem [resolvable:$true] %s45
      %51 = dma.hbm_to_vmem [thread:$0]  %s44, 256, %s46, [#allocation6], 64, 64, 4
    $region17: #{tpu_custom_call.1} parent=1 // pred_fallthru
      _
    // Predicated region
    $region18: #{tpu_custom_call.1} parent=1 // pred_check
      _
    $region19: #{tpu_custom_call.1} parent=1 // pred_check_branch
      %53 = sbr.rel (0) target = $region21
    $region20: #{tpu_custom_call.1} parent=1 // pred_region
      _
    $region21: #{tpu_custom_call.1} parent=1 // pred_fallthru
      _
    // Predicated region
    $region22: #{tpu_custom_call.1} parent=1 // pred_check
      _
    $region23: #{tpu_custom_call.1} parent=1 // pred_check_branch
      %55 = sbr.rel (0) target = $region25
    $region24: #{tpu_custom_call.1} parent=1 // pred_region
      %57 = dma.done [#allocation3], 32
    $region25: #{tpu_custom_call.1} parent=1 // pred_fallthru
      _
    // Predicated region
    $region26: #{tpu_custom_call.1} parent=1 // pred_check
      _
    $region27: #{tpu_custom_call.1} parent=1 // pred_check_branch
      %59 = sbr.rel (0) target = $region29
    $region28: #{tpu_custom_call.1} parent=1 // pred_region
      %61 = dma.done [#allocation6], 128
    $region29: #{tpu_custom_call.1} parent=1 // pred_fallthru
      _
    // Predicated region
    $region30: #{tpu_custom_call.1} parent=1 // pred_check
      _
    $region31: #{tpu_custom_call.1} parent=1 // pred_check_branch
      %63 = sbr.rel (0) target = $region33
    $region32: #{tpu_custom_call.1} parent=1 // pred_region
      %65 = dma.done [#allocation6], 256
    $region33: #{tpu_custom_call.1} parent=1 // pred_fallthru
      _
    %v67 = vld [vmem:[#allocation2] sm:$0x3]
    %v68 = vpack.c.bf16 %v67, %v67
    %v69 = vld [vmem:[#allocation5] sm:$0xf]
    %v70 = vld [vmem:[#allocation5 + $0x4] sm:$0xf]
    %v71 = vld [vmem:[%s2] sm:$0x1]
    %v73 = vperm.slane %v71, 0
    %v77 = vunpack.c.l.b16 %v69
    %v78 = vunpack.c.l.b16 %v70
    %v79 = vpack.c.b16 %v78, %v77
    %vm81 = vcmask 130048
    %v83 = vsel %vm81, %v68, 0
    %85 = vmatpush.bf16.msra.mxu0 0
    %86 = vmatpush.bf16.msra.mxu0 0
    %87 = vmatpush.bf16.msra.mxu0 0
    %88 = vmatpush.bf16.msra.mxu0 0
    %89 = vmatpush.bf16.msra.mxu0 0
    %90 = vmatpush.bf16.msra.mxu0 0
    %91 = vmatpush.bf16.msra.mxu0 0
    %92 = vmatpush.bf16.msra.mxu0 %v79
    %93 = vmatmul.bf16.gmra.mxu0 %v83
    %v94 = vpop.f32.mrf.mxu0
    %v95 = vadd.f32 %v73, %v94
    %v96 = vpop.f32.mrf.mxu0
    %97 = vdwg.mxu0
    %v98 = vmax.f32 %v95, 0.0
    %v99 = vpack.c.bf16 %v98, %v98
    %v100 = vld [vmem:[#allocation7] sm:$0xf]
    %v101 = vld [vmem:[#allocation7 + $0x4] sm:$0xf]
    %v102 = vld [vmem:[#allocation7 + $0x8] sm:$0xf]
    %v103 = vld [vmem:[#allocation7 + $0xc] sm:$0xf]
    %v104 = vld [vmem:[%s4] sm:$0x1]
    %v106 = vperm.slane %v104, 0
    %v112 = vunpack.c.l.b16 %v100
    %v113 = vunpack.c.l.b16 %v101
    %v114 = vunpack.c.l.b16 %v102
    %v115 = vunpack.c.l.b16 %v103
    %v116 = vpack.c.b16 %v113, %v112
    %v117 = vpack.c.b16 %v115, %v114
    %vm120 = vcmask 261120
    %v122 = vsel %vm120, %v99, 0
    %124 = vmatpush.bf16.msra.mxu0 0
    %125 = vmatpush.bf16.msra.mxu0 0
    %126 = vmatpush.bf16.msra.mxu0 0
    %127 = vmatpush.bf16.msra.mxu0 0
    %128 = vmatpush.bf16.msra.mxu0 0
    %129 = vmatpush.bf16.msra.mxu0 0
    %130 = vmatpush.bf16.msra.mxu0 %v117
    %131 = vmatpush.bf16.msra.mxu0 %v116
    %132 = vmatmul.bf16.gmra.mxu0 %v122
    %v133 = vpop.f32.mrf.mxu0
    %v134 = vadd.f32 %v106, %v133
    %v135 = vpop.f32.mrf.mxu0
    %136 = vdwg.mxu0
    %v137 = vmax.f32 %v134, 0.0
    %138 = vst [vmem:[#allocation8] sm:$0x3] %v137
    // Predicated region
    $region34: #{tpu_custom_call.1} parent=1 // pred_check
      _
    $region35: #{tpu_custom_call.1} parent=1 // pred_check_branch
      %140 = sbr.rel (0) target = $region37
    $region36: #{tpu_custom_call.1} parent=1 // pred_region
      %142 = vsyncadd [#allocation4], 0
      %s144 = sshll.u32 [#allocation8], 4
      %s145 = int_to_ptr.vmem [resolvable:$true] %s144
      %s146 = sshll.u32 %s5, 4
      %s147 = int_to_ptr.hbm [resolvable:$true] %s146
      %149 = dma.vmem_to_hbm [thread:$0]  %s145, 32, %s147, [#allocation4]
    $region37: #{tpu_custom_call.1} parent=1 // pred_fallthru
      _
    // Predicated region
    $region38: #{tpu_custom_call.1} parent=1 // pred_check
      _
    $region39: #{tpu_custom_call.1} parent=1 // pred_check_branch
      %151 = sbr.rel (0) target = $region41
    $region40: #{tpu_custom_call.1} parent=1 // pred_region
      %153 = dma.done [#allocation4], 32
    $region41: #{tpu_custom_call.1} parent=1 // pred_fallthru
      _
    %154 = vsyncpa [#allocation3], 1
    %155 = vsyncpa [#allocation6], 1
    %156 = vsyncpa [#allocation4], 1

</llo_original>
